<compile_context>
chip_gen: v7x
topology: tpu7x:2x2x1
jax: 0.10.0
libtpu: 0.0.40
codegen_flags: <defaults>
</compile_context>

<pallas_src>
import functools

import jax
import jax.numpy as jnp
from jax.experimental import pallas as pl
from jax.experimental.pallas import tpu as pltpu


def _round_up(x, m):
    return (x + m - 1) // m * m


# ---------------------------------------------------------------------------
# Kernel 1: binarize adjacency (+ diag fill on diagonal tiles only) + degrees.
# Grid: (row tiles, col tiles).  Col axis is the rowsum reduction -> last,
# "arbitrary"; row axis "parallel" (sharded across TCs on v7x megacore).
# ---------------------------------------------------------------------------
def _binarize_degree_kernel(adj_ref, abin_ref, dn_ref, *, threshold):
    i = pl.program_id(0)
    k = pl.program_id(1)

    # Binarize in f32 (never cast adj before the compare).
    a = (adj_ref[...] > threshold).astype(jnp.float32)
    abin_ref[...] = a.astype(jnp.bfloat16)  # 0/1 values are exact in bf16

    # fill_diagonal_(1): only diagonal tiles pay for the iota/select work.
    @pl.when(i == k)
    def _():
        shp = abin_ref.shape
        r = jax.lax.broadcasted_iota(jnp.int32, shp, 0)
        c = jax.lax.broadcasted_iota(jnp.int32, shp, 1)
        patched = jnp.where(r == c, jnp.float32(1.0),
                            abin_ref[...].astype(jnp.float32))
        abin_ref[...] = patched.astype(jnp.bfloat16)

    # Partial row degrees, accumulated across the col-tile axis.  The dn output
    # block index ignores k, so it stays resident in VMEM across the reduction.
    @pl.when(k == 0)
    def _():
        dn_ref[...] = jnp.zeros_like(dn_ref)

    dn_ref[...] += jnp.sum(abin_ref[...].astype(jnp.float32),
                           axis=1, keepdims=True)

    @pl.when(k == pl.num_programs(1) - 1)
    def _():
        # deg >= 1 thanks to the diagonal fill, so rsqrt is always finite.
        dn_ref[...] = jax.lax.rsqrt(dn_ref[...])


# ---------------------------------------------------------------------------
# Kernel 2: fused linear + symmetric-normalized propagation.
#   out[i,:] = dn_rows[i] * sum_k  A[i,k] @ ( dn[k] * (Hin[k] @ W^T + b) )
# Grid: (output-row tiles "parallel", K reduction "arbitrary" — last).
# The small Hin @ W^T linear is recomputed per row tile (extra flops ~ C_in/tm,
# a couple of percent) which keeps the whole layer fused in one pass over A.
# ---------------------------------------------------------------------------
def _prop_kernel(abin_ref, hin_ref, wt_ref, b_ref, dnk_ref, dni_ref,
                 out_ref, acc_ref, *, relu):
    k = pl.program_id(1)

    @pl.when(k == 0)
    def _():
        acc_ref[...] = jnp.zeros_like(acc_ref)

    # s = dn_k * (Hin_k @ W^T + b): elementwise math in f32 (v5e-friendly),
    # downcast to bf16 only as MXU input.  a_bin is exact in bf16.
    h = jnp.dot(hin_ref[...], wt_ref[...],
                preferred_element_type=jnp.float32) + b_ref[...]
    s = (dnk_ref[...] * h).astype(jnp.bfloat16)

    acc_ref[...] += jnp.dot(abin_ref[...], s,
                            preferred_element_type=jnp.float32)

    @pl.when(k == pl.num_programs(1) - 1)
    def _():
        r = dni_ref[...] * acc_ref[...]
        if relu:
            r = jnp.maximum(r, 0.0)
        out_ref[...] = r.astype(out_ref.dtype)


def _propagate(a_rows, dn_rows, hin, wt, b, dn_full, *, tm, tk, relu,
               vmem_limit):
    """out = dn_rows * (a_rows @ (dn_full * (hin @ wt + b))), optional ReLU."""
    m, n = a_rows.shape
    c_in = hin.shape[1]
    c_out = wt.shape[1]
    grid = (m // tm, n // tk)
    return pl.pallas_call(
        functools.partial(_prop_kernel, relu=relu),
        grid_spec=pltpu.PrefetchScalarGridSpec(
            num_scalar_prefetch=0,
            grid=grid,
            in_specs=[
                pl.BlockSpec((tm, tk), lambda i, k: (i, k)),       # A rows (bf16)
                pl.BlockSpec((tk, c_in), lambda i, k: (k, 0)),     # Hin
                pl.BlockSpec((c_in, c_out), lambda i, k: (0, 0)),  # W^T (resident)
                pl.BlockSpec((1, c_out), lambda i, k: (0, 0)),     # bias
                pl.BlockSpec((tk, 1), lambda i, k: (k, 0)),        # dn (columns)
                pl.BlockSpec((tm, 1), lambda i, k: (i, 0)),        # dn (rows)
            ],
            out_specs=pl.BlockSpec((tm, c_out), lambda i, k: (i, 0)),
            scratch_shapes=[pltpu.VMEM((tm, c_out), jnp.float32)],
        ),
        out_shape=jax.ShapeDtypeStruct((m, c_out), jnp.float32),
        compiler_params=pltpu.CompilerParams(
            dimension_semantics=("parallel", "arbitrary"),
            vmem_limit_bytes=vmem_limit),
    )(a_rows, hin, wt, b, dn_full, dn_rows)


def simple_gcn_forward(x_indices, adj, X, w1, b1, w2, b2, threshold=0.5,
                       tile=512):
    """Pallas implementation of SimpleGCN.forward (update_adj=True, eval dropout)."""
    n = adj.shape[0]
    c_in = X.shape[1]
    c_hid = w1.shape[0]
    c_out = w2.shape[0]
    n_idx = int(x_indices.shape[0])

    # Explicit scoped-VMEM budget: safe on v7x (64 MiB physical), raises v5e's
    # 16 MiB default.  Per-call footprint at tile=512 is only a few MiB.
    vmem_limit = 32 * 1024 * 1024

    # ---- padded, lane-dense layouts (all padding is mathematically exact) ----
    t = tile if n >= tile else _round_up(n, 128)
    n_pad = _round_up(n, t)
    c_hid_p = _round_up(c_hid, 128)
    c_out_p = _round_up(c_out, 128)

    # Pad adj with a very negative value so padded entries binarize to 0.
    adj_p = jnp.pad(adj.astype(jnp.float32),
                    ((0, n_pad - n), (0, n_pad - n)), constant_values=-1e30)
    x_p = jnp.pad(X.astype(jnp.float32), ((0, n_pad - n), (0, 0)))
    w1t = jnp.zeros((c_in, c_hid_p), jnp.float32).at[:, :c_hid].set(
        w1.T.astype(jnp.float32))
    b1p = jnp.zeros((1, c_hid_p), jnp.float32).at[0, :c_hid].set(
        b1.astype(jnp.float32))
    w2t = jnp.zeros((c_hid_p, c_out_p), jnp.float32).at[:c_hid, :c_out].set(
        w2.T.astype(jnp.float32))
    b2p = jnp.zeros((1, c_out_p), jnp.float32).at[0, :c_out].set(
        b2.astype(jnp.float32))

    # ---- pass 1: binarize + degree-normalization factors ----
    n_tiles = n_pad // t
    a_bin, dn = pl.pallas_call(
        functools.partial(_binarize_degree_kernel, threshold=float(threshold)),
        grid_spec=pltpu.PrefetchScalarGridSpec(
            num_scalar_prefetch=0,
            grid=(n_tiles, n_tiles),
            in_specs=[pl.BlockSpec((t, t), lambda i, k: (i, k))],
            out_specs=[pl.BlockSpec((t, t), lambda i, k: (i, k)),
                       pl.BlockSpec((t, 1), lambda i, k: (i, 0))],
        ),
        out_shape=(jax.ShapeDtypeStruct((n_pad, n_pad), jnp.bfloat16),
                   jax.ShapeDtypeStruct((n_pad, 1), jnp.float32)),
        compiler_params=pltpu.CompilerParams(
            dimension_semantics=("parallel", "arbitrary"),
            vmem_limit_bytes=vmem_limit),
    )(adj_p)

    # ---- pass 2: h1 = relu(aug_A @ (X @ W1^T + b1)) over all rows ----
    h1 = _propagate(a_bin, dn, x_p, w1t, b1p, dn,
                    tm=t, tk=t, relu=True, vmem_limit=vmem_limit)

    # ---- pass 3: second propagation, only for the rows requested by x_indices ----
    # Gather the needed rows of a_bin / dn up front so the last matmul computes
    # just |idx| output rows (instead of N) and never writes an [N, C_out] slab.
    if n_idx >= t:
        m_sel = _round_up(n_idx, t)
        tm2 = t
    else:
        m_sel = _round_up(max(n_idx, 1), 8)
        tm2 = m_sel
    idx = x_indices.astype(jnp.int32)
    idx_pad = jnp.zeros((m_sel,), jnp.int32).at[:n_idx].set(idx)
    a_sel = a_bin[idx_pad]   # [m_sel, n_pad] bf16 row gather (cheap glue)
    dn_sel = dn[idx_pad]     # [m_sel, 1]

    out_p = _propagate(a_sel, dn_sel, h1, w2t, b2p, dn,
                       tm=tm2, tk=t, relu=False, vmem_limit=vmem_limit)
    return out_p[:n_idx, :c_out]


def _reference_forward(x_indices, adj, X, w1, b1, w2, b2, threshold=0.5):
    """Pure-JAX f32 reference mirroring the PyTorch forward (eval-mode dropout)."""
    n = adj.shape[0]
    a = (adj > threshold).astype(jnp.float32)
    a = a.at[jnp.arange(n), jnp.arange(n)].set(1.0)
    d = jnp.diag(jnp.sum(a, axis=1) ** -0.5)
    aug = d @ a @ d
    h = X @ w1.T + b1
    h = aug @ h
    h = jnp.maximum(h, 0.0)
    h = h @ w2.T + b2
    h = aug @ h
    return h[x_indices]


if __name__ == "__main__":
    key = jax.random.PRNGKey(0)
    N, C_IN, C_HID, C_OUT = 16, 8, 32, 4
    k1, k2, k3, k4, k5, k6 = jax.random.split(key, 6)

    init_adj = jax.random.uniform(k1, (N, N), dtype=jnp.float32)
    X = jax.random.normal(k2, (N, C_IN), dtype=jnp.float32)
    w1 = jax.random.normal(k3, (C_HID, C_IN), dtype=jnp.float32) / jnp.sqrt(C_IN)
    b1 = 0.1 * jax.random.normal(k4, (C_HID,), dtype=jnp.float32)
    w2 = jax.random.normal(k5, (C_OUT, C_HID), dtype=jnp.float32) / jnp.sqrt(C_HID)
    b2 = 0.1 * jax.random.normal(k6, (C_OUT,), dtype=jnp.float32)
    x_indices = jnp.array([0, 3, 5, 7, 11], dtype=jnp.int32)

    out = simple_gcn_forward(x_indices, init_adj, X, w1, b1, w2, b2, threshold=0.5)
    out = jax.block_until_ready(out)

    ref = _reference_forward(x_indices, init_adj, X, w1, b1, w2, b2, threshold=0.5)
    assert out.shape == (x_indices.shape[0], C_OUT)
    # Propagation matmuls feed the MXU in bf16 (a_bin is exact; scaled
    # activations lose ~2^-9 relative) -> slightly looser tolerance than f32.
    assert jnp.allclose(out, ref, atol=2e-2, rtol=2e-2), "mismatch vs reference"

    print("KERNEL_OK")
</pallas_src>

<mosaic_0001>
module attributes {stable_mosaic.version = 11 : i64} {
  func.func @_binarize_degree_kernel(%arg0: i32, %arg1: i32, %arg2: memref<128x128xf32, #tpu.memory_space<vmem>>, %arg3: memref<128x128xbf16, #tpu.memory_space<vmem>>, %arg4: memref<128x1xf32, #tpu.memory_space<vmem>>) attributes {dimension_semantics = [#tpu.dimension_semantics<parallel>, #tpu.dimension_semantics<arbitrary>], iteration_bounds = array<i64: 1, 1>, scalar_prefetch = 0 : i64, scratch_operands = 0 : i64, tpu.core_type = #tpu.core_type<tc>, window_params = [{transform_indices = @transform_0, window_bounds = array<i64: 128, 128>}, {transform_indices = @transform_1, window_bounds = array<i64: 128, 128>}, {transform_indices = @transform_2, window_bounds = array<i64: 128, 1>}]} {
    %c0 = arith.constant 0 : index
    %c0_0 = arith.constant 0 : index
    %0 = vector.load %arg2[%c0, %c0_0] : memref<128x128xf32, #tpu.memory_space<vmem>>, vector<128x128xf32>
    %cst = arith.constant 5.000000e-01 : f32
    %1 = vector.broadcast %cst : f32 to vector<128x128xf32>
    %2 = arith.cmpf ogt, %0, %1 : vector<128x128xf32>
    %3 = arith.extui %2 : vector<128x128xi1> to vector<128x128xi32>
    %4 = arith.sitofp %3 : vector<128x128xi32> to vector<128x128xf32>
    %5 = arith.truncf %4 : vector<128x128xf32> to vector<128x128xbf16>
    %c0_1 = arith.constant 0 : index
    %c0_2 = arith.constant 0 : index
    %6 = vector.load %arg3[%c0_1, %c0_2] : memref<128x128xbf16, #tpu.memory_space<vmem>>, vector<128x128xbf16>
    tpu.vector_store %arg3[%c0_1, %c0_2], %5 {strides = array<i32>} : memref<128x128xbf16, #tpu.memory_space<vmem>>, vector<128x128xbf16>,
    %7 = arith.cmpi eq, %arg0, %arg1 : i32
    %8 = arith.extui %7 : i1 to i32
    %c0_i32 = arith.constant 0 : i32
    %9 = arith.cmpi ne, %8, %c0_i32 : i32
    scf.if %9 {
      %23 = tpu.iota {dimensions = array<i32: 0>} : vector<128x128xi32>
      %24 = tpu.iota {dimensions = array<i32: 1>} : vector<128x128xi32>
      %25 = arith.cmpi eq, %23, %24 : vector<128x128xi32>
      %c0_14 = arith.constant 0 : index
      %c0_15 = arith.constant 0 : index
      %26 = vector.load %arg3[%c0_14, %c0_15] : memref<128x128xbf16, #tpu.memory_space<vmem>>, vector<128x128xbf16>
      %27 = arith.extf %26 : vector<128x128xbf16> to vector<128x128xf32>
      %cst_16 = arith.constant 1.000000e+00 : f32
      %28 = vector.broadcast %cst_16 : f32 to vector<128x128xf32>
      %29 = arith.select %25, %28, %27 : vector<128x128xi1>, vector<128x128xf32>
      %30 = arith.truncf %29 : vector<128x128xf32> to vector<128x128xbf16>
      %c0_17 = arith.constant 0 : index
      %c0_18 = arith.constant 0 : index
      %31 = vector.load %arg3[%c0_17, %c0_18] : memref<128x128xbf16, #tpu.memory_space<vmem>>, vector<128x128xbf16>
      tpu.vector_store %arg3[%c0_17, %c0_18], %30 {strides = array<i32>} : memref<128x128xbf16, #tpu.memory_space<vmem>>, vector<128x128xbf16>,
    } else {
    }
    %c0_i32_3 = arith.constant 0 : i32
    %10 = arith.cmpi eq, %arg1, %c0_i32_3 : i32
    %11 = arith.extui %10 : i1 to i32
    %c0_i32_4 = arith.constant 0 : i32
    %12 = arith.cmpi ne, %11, %c0_i32_4 : i32
    scf.if %12 {
      %cst_14 = arith.constant 0.000000e+00 : f32
      %23 = vector.broadcast %cst_14 : f32 to vector<128x1xf32>
      %c0_15 = arith.constant 0 : index
      %c0_16 = arith.constant 0 : index
      %24 = vector.load %arg4[%c0_15, %c0_16] : memref<128x1xf32, #tpu.memory_space<vmem>>, vector<128x1xf32>
      tpu.vector_store %arg4[%c0_15, %c0_16], %23 {strides = array<i32>} : memref<128x1xf32, #tpu.memory_space<vmem>>, vector<128x1xf32>,
    } else {
    }
    %c0_5 = arith.constant 0 : index
    %c0_6 = arith.constant 0 : index
    %13 = vector.load %arg4[%c0_5, %c0_6] : memref<128x1xf32, #tpu.memory_space<vmem>>, vector<128x1xf32>
    %c0_7 = arith.constant 0 : index
    %c0_8 = arith.constant 0 : index
    %14 = vector.load %arg3[%c0_7, %c0_8] : memref<128x128xbf16, #tpu.memory_space<vmem>>, vector<128x128xbf16>
    %15 = arith.extf %14 : vector<128x128xbf16> to vector<128x128xf32>
    %cst_9 = arith.constant dense<0.000000e+00> : vector<128xf32>
    %16 = vector.multi_reduction <add>, %15, %cst_9 [1] : vector<128x128xf32> to vector<128xf32>
    %17 = vector.shape_cast %16 : vector<128xf32> to vector<128x1xf32>
    %18 = arith.addf %13, %17 : vector<128x1xf32>
    %c0_10 = arith.constant 0 : index
    %c0_11 = arith.constant 0 : index
    %19 = vector.load %arg4[%c0_10, %c0_11] : memref<128x1xf32, #tpu.memory_space<vmem>>, vector<128x1xf32>
    tpu.vector_store %arg4[%c0_10, %c0_11], %18 {strides = array<i32>} : memref<128x1xf32, #tpu.memory_space<vmem>>, vector<128x1xf32>,
    %c0_i32_12 = arith.constant 0 : i32
    %20 = arith.cmpi eq, %arg1, %c0_i32_12 : i32
    %21 = arith.extui %20 : i1 to i32
    %c0_i32_13 = arith.constant 0 : i32
    %22 = arith.cmpi ne, %21, %c0_i32_13 : i32
    scf.if %22 {
      %c0_14 = arith.constant 0 : index
      %c0_15 = arith.constant 0 : index
      %23 = vector.load %arg4[%c0_14, %c0_15] : memref<128x1xf32, #tpu.memory_space<vmem>>, vector<128x1xf32>
      %24 = math.rsqrt %23 : vector<128x1xf32>
      %c0_16 = arith.constant 0 : index
      %c0_17 = arith.constant 0 : index
      %25 = vector.load %arg4[%c0_16, %c0_17] : memref<128x1xf32, #tpu.memory_space<vmem>>, vector<128x1xf32>
      tpu.vector_store %arg4[%c0_16, %c0_17], %24 {strides = array<i32>} : memref<128x1xf32, #tpu.memory_space<vmem>>, vector<128x1xf32>,
    } else {
    }
    return
  }
  func.func @transform_0(%arg0: i32, %arg1: i32) -> (i32, i32) {
    %c0_i32 = arith.constant 0 : i32
    return %arg0, %arg1 : i32, i32
  }
  func.func @transform_1(%arg0: i32, %arg1: i32) -> (i32, i32) {
    %c0_i32 = arith.constant 0 : i32
    return %arg0, %arg1 : i32, i32
  }
  func.func @transform_2(%arg0: i32, %arg1: i32) -> (i32, i32) {
    %c0_i32 = arith.constant 0 : i32
    %c0_i32_0 = arith.constant 0 : i32
    return %arg0, %c0_i32 : i32, i32
  }
}

</mosaic_0001>

<llo_original>
// kernel: tpu_custom_call.1
$region0: #{tpu_custom_call.1}
  #allocation0 [shape = 'u32[]', space=smem, size = 0x4, offset = 0x4, fixed_abs, tag = 'smem constant byte address 0x4 - core index']
  #allocation1 [shape = 'u32[144,128]{1,0:T(1,128)}', space=vmem, size = 0x12000, scoped, tag = 'internal scratch']
  %s0 = inlined_call_operand.hbm [shape: f32[128,128], index: 0, kind: input, shape index: {}]
  %s1 = inlined_call_operand.hbm [shape: bf16[128,128], index: 1, kind: output, shape index: {0}]
  %s2 = inlined_call_operand.vmem [shape: f32[128,1], index: 2, kind: output, shape index: {1}]
  %3 = xla_tuple %s1, %s2
  %s4 = sld [smem:[#allocation0]]
  $region38: #{tpu_custom_call.1} parent=0
    _
  %s6 = ssub.s32 1, %s4
  %s7 = scalar_select 0, %s6, %s4
  $region1: #{tpu_custom_call.1} parent=0
    #allocation2 [shape = 'u8[65536]{0}', space=vmem, size = 0x10000, scoped, tag = 'input window, operand 0, single buffered']
    #allocation3 [shape = 's32[1]{0}', space=sflag, size = 0x4, scoped, tag = 'scoped memory for tpu_custom_call.1']
    #allocation4 [shape = 's32[1]{0}', space=sflag, size = 0x4, scoped, tag = 'scoped memory for tpu_custom_call.1']
    #allocation5 [shape = 'u8[32768]{0}', space=vmem, size = 0x8000, scoped, tag = 'output window, operand 0, single buffered']
    %8 = vsyncpa [#allocation3], 0
    %9 = vsyncpa [#allocation4], 0
    // Predicated region
    $region2: #{tpu_custom_call.1} parent=1 // pred_check
      _
    $region3: #{tpu_custom_call.1} parent=1 // pred_check_branch
      %11 = sbr.rel (0) target = $region5
    $region4: #{tpu_custom_call.1} parent=1 // pred_region
      %s13 = ssub.s32 2048, 2048
      %14 = vsyncadd [#allocation3], %s13
      %s15 = sshll.u32 [#allocation2], 4
      %s16 = int_to_ptr.vmem [resolvable:$true] %s15
      %21 = dma.hbm_to_vmem [thread:$0]  %s0, 2048, %s16, [#allocation3], 128, 128, 8
    $region5: #{tpu_custom_call.1} parent=1 // pred_fallthru
      _
    // Predicated region
    $region6: #{tpu_custom_call.1} parent=1 // pred_check
      _
    $region7: #{tpu_custom_call.1} parent=1 // pred_check_branch
      %23 = sbr.rel (0) target = $region9
    $region8: #{tpu_custom_call.1} parent=1 // pred_region
      %24 = dma.done [#allocation3], 2048
    $region9: #{tpu_custom_call.1} parent=1 // pred_fallthru
      _
    %v25 = vld [vmem:[#allocation2] sm:$0xff]
    %v26 = vld [vmem:[#allocation2 + $0x8] sm:$0xff]
    %v27 = vld [vmem:[#allocation2 + $0x10] sm:$0xff]
    %v28 = vld [vmem:[#allocation2 + $0x18] sm:$0xff]
    %v29 = vld [vmem:[#allocation2 + $0x20] sm:$0xff]
    %v30 = vld [vmem:[#allocation2 + $0x28] sm:$0xff]
    %v31 = vld [vmem:[#allocation2 + $0x30] sm:$0xff]
    %v32 = vld [vmem:[#allocation2 + $0x38] sm:$0xff]
    %v33 = vld [vmem:[#allocation2 + $0x40] sm:$0xff]
    %v34 = vld [vmem:[#allocation2 + $0x48] sm:$0xff]
    %v35 = vld [vmem:[#allocation2 + $0x50] sm:$0xff]
    %v36 = vld [vmem:[#allocation2 + $0x58] sm:$0xff]
    %v37 = vld [vmem:[#allocation2 + $0x60] sm:$0xff]
    %v38 = vld [vmem:[#allocation2 + $0x68] sm:$0xff]
    %v39 = vld [vmem:[#allocation2 + $0x70] sm:$0xff]
    %v40 = vld [vmem:[#allocation2 + $0x78] sm:$0xff]
    %vm41 = vcmp.gt.f32.partialorder %v25, 0.5
    %vm42 = vcmp.gt.f32.partialorder %v26, 0.5
    %vm43 = vcmp.gt.f32.partialorder %v27, 0.5
    %vm44 = vcmp.gt.f32.partialorder %v28, 0.5
    %vm45 = vcmp.gt.f32.partialorder %v29, 0.5
    %vm46 = vcmp.gt.f32.partialorder %v30, 0.5
    %vm47 = vcmp.gt.f32.partialorder %v31, 0.5
    %vm48 = vcmp.gt.f32.partialorder %v32, 0.5
    %vm49 = vcmp.gt.f32.partialorder %v33, 0.5
    %vm50 = vcmp.gt.f32.partialorder %v34, 0.5
    %vm51 = vcmp.gt.f32.partialorder %v35, 0.5
    %vm52 = vcmp.gt.f32.partialorder %v36, 0.5
    %vm53 = vcmp.gt.f32.partialorder %v37, 0.5
    %vm54 = vcmp.gt.f32.partialorder %v38, 0.5
    %vm55 = vcmp.gt.f32.partialorder %v39, 0.5
    %vm56 = vcmp.gt.f32.partialorder %v40, 0.5
    %v57 = vsel %vm41, 1, 0
    %v58 = vsel %vm42, 1, 0
    %v59 = vsel %vm43, 1, 0
    %v60 = vsel %vm44, 1, 0
    %v61 = vsel %vm45, 1, 0
    %v62 = vsel %vm46, 1, 0
    %v63 = vsel %vm47, 1, 0
    %v64 = vsel %vm48, 1, 0
    %v65 = vsel %vm49, 1, 0
    %v66 = vsel %vm50, 1, 0
    %v67 = vsel %vm51, 1, 0
    %v68 = vsel %vm52, 1, 0
    %v69 = vsel %vm53, 1, 0
    %v70 = vsel %vm54, 1, 0
    %v71 = vsel %vm55, 1, 0
    %v72 = vsel %vm56, 1, 0
    %v73 = vcvt.s32.f32 %v57
    %v74 = vcvt.s32.f32 %v58
    %v75 = vcvt.s32.f32 %v59
    %v76 = vcvt.s32.f32 %v60
    %v77 = vcvt.s32.f32 %v61
    %v78 = vcvt.s32.f32 %v62
    %v79 = vcvt.s32.f32 %v63
    %v80 = vcvt.s32.f32 %v64
    %v81 = vcvt.s32.f32 %v65
    %v82 = vcvt.s32.f32 %v66
    %v83 = vcvt.s32.f32 %v67
    %v84 = vcvt.s32.f32 %v68
    %v85 = vcvt.s32.f32 %v69
    %v86 = vcvt.s32.f32 %v70
    %v87 = vcvt.s32.f32 %v71
    %v88 = vcvt.s32.f32 %v72
    %v89 = vpack.c.bf16 %v74, %v73
    %v90 = vpack.c.bf16 %v76, %v75
    %v91 = vpack.c.bf16 %v78, %v77
    %v92 = vpack.c.bf16 %v80, %v79
    %v93 = vpack.c.bf16 %v82, %v81
    %v94 = vpack.c.bf16 %v84, %v83
    %v95 = vpack.c.bf16 %v86, %v85
    %v96 = vpack.c.bf16 %v88, %v87
    %v105 = vunpack.c.l.b16 %v89
    %v106 = vunpack.c.h.b16 %v89
    %v107 = vunpack.c.l.b16 %v90
    %v108 = vunpack.c.h.b16 %v90
    %v109 = vunpack.c.l.b16 %v91
    %v110 = vunpack.c.h.b16 %v91
    %v111 = vunpack.c.l.b16 %v92
    %v112 = vunpack.c.h.b16 %v92
    %v113 = vunpack.c.l.b16 %v93
    %v114 = vunpack.c.h.b16 %v93
    %v115 = vunpack.c.l.b16 %v94
    %v116 = vunpack.c.h.b16 %v94
    %v117 = vunpack.c.l.b16 %v95
    %v118 = vunpack.c.h.b16 %v95
    %v119 = vunpack.c.l.b16 %v96
    %v120 = vunpack.c.h.b16 %v96
    %v121 = vpack.c.b16 %v105, %v105
    %v122 = vpack.c.b16 %v106, %v106
    %v123 = vpack.c.b16 %v107, %v107
    %v124 = vpack.c.b16 %v108, %v108
    %v125 = vpack.c.b16 %v109, %v109
    %v126 = vpack.c.b16 %v110, %v110
    %v127 = vpack.c.b16 %v111, %v111
    %v128 = vpack.c.b16 %v112, %v112
    %v129 = vpack.c.b16 %v113, %v113
    %v130 = vpack.c.b16 %v114, %v114
    %v131 = vpack.c.b16 %v115, %v115
    %v132 = vpack.c.b16 %v116, %v116
    %v133 = vpack.c.b16 %v117, %v117
    %v134 = vpack.c.b16 %v118, %v118
    %v135 = vpack.c.b16 %v119, %v119
    %v136 = vpack.c.b16 %v120, %v120
    %153 = vst [vmem:[#allocation5] sm:$0xf] %v121
    %154 = vst [vmem:[#allocation5 + $0x4] sm:$0xf] %v122
    %155 = vst [vmem:[#allocation5 + $0x8] sm:$0xf] %v123
    %156 = vst [vmem:[#allocation5 + $0xc] sm:$0xf] %v124
    %157 = vst [vmem:[#allocation5 + $0x10] sm:$0xf] %v125
    %158 = vst [vmem:[#allocation5 + $0x14] sm:$0xf] %v126
    %159 = vst [vmem:[#allocation5 + $0x18] sm:$0xf] %v127
    %160 = vst [vmem:[#allocation5 + $0x1c] sm:$0xf] %v128
    %161 = vst [vmem:[#allocation5 + $0x20] sm:$0xf] %v129
    %162 = vst [vmem:[#allocation5 + $0x24] sm:$0xf] %v130
    %163 = vst [vmem:[#allocation5 + $0x28] sm:$0xf] %v131
    %164 = vst [vmem:[#allocation5 + $0x2c] sm:$0xf] %v132
    %165 = vst [vmem:[#allocation5 + $0x30] sm:$0xf] %v133
    %166 = vst [vmem:[#allocation5 + $0x34] sm:$0xf] %v134
    %167 = vst [vmem:[#allocation5 + $0x38] sm:$0xf] %v135
    %168 = vst [vmem:[#allocation5 + $0x3c] sm:$0xf] %v136
    %p169 = scmp.eq.s32.totalorder 0, 0
    // Predicated region
    $region10: #{tpu_custom_call.1} parent=1 // pred_check
      %p170 = pneg %p169
    $region11: #{tpu_custom_call.1} parent=1 // pred_check_branch
      %172 = sbr.rel (%p170) target = $region13
    $region12: #{tpu_custom_call.1} parent=1 // pred_region
      %v173 = vlaneseq
      %v174 = vshrl.u32 %v173, 7
      %v175 = vadd.s32 %v174, 8
      %v176 = vadd.s32 %v174, 16
      %v177 = vadd.s32 %v174, 24
      %v178 = vadd.s32 %v174, 32
      %v179 = vadd.s32 %v174, 40
      %v180 = vadd.s32 %v174, 48
      %v181 = vadd.s32 %v174, 56
      %v182 = vadd.s32 %v174, 64
      %v183 = vadd.s32 %v174, 72
      %v184 = vadd.s32 %v174, 80
      %v185 = vadd.s32 %v174, 88
      %v186 = vadd.s32 %v174, 96
      %v187 = vadd.s32 %v174, 104
      %v188 = vadd.s32 %v174, 112
      %v189 = vadd.s32 %v174, 120
      %v190 = vlaneseq
      %v191 = vand.u32 %v190, 127
      %vm192 = vcmp.eq.s32.totalorder %v174, %v191
      %vm193 = vcmp.eq.s32.totalorder %v175, %v191
      %vm194 = vcmp.eq.s32.totalorder %v176, %v191
      %vm195 = vcmp.eq.s32.totalorder %v177, %v191
      %vm196 = vcmp.eq.s32.totalorder %v178, %v191
      %vm197 = vcmp.eq.s32.totalorder %v179, %v191
      %vm198 = vcmp.eq.s32.totalorder %v180, %v191
      %vm199 = vcmp.eq.s32.totalorder %v181, %v191
      %vm200 = vcmp.eq.s32.totalorder %v182, %v191
      %vm201 = vcmp.eq.s32.totalorder %v183, %v191
      %vm202 = vcmp.eq.s32.totalorder %v184, %v191
      %vm203 = vcmp.eq.s32.totalorder %v185, %v191
      %vm204 = vcmp.eq.s32.totalorder %v186, %v191
      %vm205 = vcmp.eq.s32.totalorder %v187, %v191
      %vm206 = vcmp.eq.s32.totalorder %v188, %v191
      %vm207 = vcmp.eq.s32.totalorder %v189, %v191
      %v208 = vld [vmem:[#allocation5] sm:$0xf]
      %v209 = vld [vmem:[#allocation5 + $0x4] sm:$0xf]
      %v210 = vld [vmem:[#allocation5 + $0x8] sm:$0xf]
      %v211 = vld [vmem:[#allocation5 + $0xc] sm:$0xf]
      %v212 = vld [vmem:[#allocation5 + $0x10] sm:$0xf]
      %v213 = vld [vmem:[#allocation5 + $0x14] sm:$0xf]
      %v214 = vld [vmem:[#allocation5 + $0x18] sm:$0xf]
      %v215 = vld [vmem:[#allocation5 + $0x1c] sm:$0xf]
      %v216 = vld [vmem:[#allocation5 + $0x20] sm:$0xf]
      %v217 = vld [vmem:[#allocation5 + $0x24] sm:$0xf]
      %v218 = vld [vmem:[#allocation5 + $0x28] sm:$0xf]
      %v219 = vld [vmem:[#allocation5 + $0x2c] sm:$0xf]
      %v220 = vld [vmem:[#allocation5 + $0x30] sm:$0xf]
      %v221 = vld [vmem:[#allocation5 + $0x34] sm:$0xf]
      %v222 = vld [vmem:[#allocation5 + $0x38] sm:$0xf]
      %v223 = vld [vmem:[#allocation5 + $0x3c] sm:$0xf]
      %v224 = vunpack.c.l.bf16 %v208
      %v225 = vunpack.c.l.bf16 %v209
      %v226 = vunpack.c.l.bf16 %v210
      %v227 = vunpack.c.l.bf16 %v211
      %v228 = vunpack.c.l.bf16 %v212
      %v229 = vunpack.c.l.bf16 %v213
      %v230 = vunpack.c.l.bf16 %v214
      %v231 = vunpack.c.l.bf16 %v215
      %v232 = vunpack.c.l.bf16 %v216
      %v233 = vunpack.c.l.bf16 %v217
      %v234 = vunpack.c.l.bf16 %v218
      %v235 = vunpack.c.l.bf16 %v219
      %v236 = vunpack.c.l.bf16 %v220
      %v237 = vunpack.c.l.bf16 %v221
      %v238 = vunpack.c.l.bf16 %v222
      %v239 = vunpack.c.l.bf16 %v223
      %v240 = vsel %vm192, 1.0, %v224
      %v241 = vsel %vm193, 1.0, %v225
      %v242 = vsel %vm194, 1.0, %v226
      %v243 = vsel %vm195, 1.0, %v227
      %v244 = vsel %vm196, 1.0, %v228
      %v245 = vsel %vm197, 1.0, %v229
      %v246 = vsel %vm198, 1.0, %v230
      %v247 = vsel %vm199, 1.0, %v231
      %v248 = vsel %vm200, 1.0, %v232
      %v249 = vsel %vm201, 1.0, %v233
      %v250 = vsel %vm202, 1.0, %v234
      %v251 = vsel %vm203, 1.0, %v235
      %v252 = vsel %vm204, 1.0, %v236
      %v253 = vsel %vm205, 1.0, %v237
      %v254 = vsel %vm206, 1.0, %v238
      %v255 = vsel %vm207, 1.0, %v239
      %v256 = vpack.c.bf16 %v241, %v240
      %v257 = vpack.c.bf16 %v243, %v242
      %v258 = vpack.c.bf16 %v245, %v244
      %v259 = vpack.c.bf16 %v247, %v246
      %v260 = vpack.c.bf16 %v249, %v248
      %v261 = vpack.c.bf16 %v251, %v250
      %v262 = vpack.c.bf16 %v253, %v252
      %v263 = vpack.c.bf16 %v255, %v254
      %v272 = vunpack.c.l.b16 %v256
      %v273 = vunpack.c.h.b16 %v256
      %v274 = vunpack.c.l.b16 %v257
      %v275 = vunpack.c.h.b16 %v257
      %v276 = vunpack.c.l.b16 %v258
      %v277 = vunpack.c.h.b16 %v258
      %v278 = vunpack.c.l.b16 %v259
      %v279 = vunpack.c.h.b16 %v259
      %v280 = vunpack.c.l.b16 %v260
      %v281 = vunpack.c.h.b16 %v260
      %v282 = vunpack.c.l.b16 %v261
      %v283 = vunpack.c.h.b16 %v261
      %v284 = vunpack.c.l.b16 %v262
      %v285 = vunpack.c.h.b16 %v262
      %v286 = vunpack.c.l.b16 %v263
      %v287 = vunpack.c.h.b16 %v263
      %v288 = vpack.c.b16 %v272, %v272
      %v289 = vpack.c.b16 %v273, %v273
      %v290 = vpack.c.b16 %v274, %v274
      %v291 = vpack.c.b16 %v275, %v275
      %v292 = vpack.c.b16 %v276, %v276
      %v293 = vpack.c.b16 %v277, %v277
      %v294 = vpack.c.b16 %v278, %v278
      %v295 = vpack.c.b16 %v279, %v279
      %v296 = vpack.c.b16 %v280, %v280
      %v297 = vpack.c.b16 %v281, %v281
      %v298 = vpack.c.b16 %v282, %v282
      %v299 = vpack.c.b16 %v283, %v283
      %v300 = vpack.c.b16 %v284, %v284
      %v301 = vpack.c.b16 %v285, %v285
      %v302 = vpack.c.b16 %v286, %v286
      %v303 = vpack.c.b16 %v287, %v287
      %320 = vst [vmem:[#allocation5] sm:$0xf] %v288
      %321 = vst [vmem:[#allocation5 + $0x4] sm:$0xf] %v289
      %322 = vst [vmem:[#allocation5 + $0x8] sm:$0xf] %v290
      %323 = vst [vmem:[#allocation5 + $0xc] sm:$0xf] %v291
      %324 = vst [vmem:[#allocation5 + $0x10] sm:$0xf] %v292
      %325 = vst [vmem:[#allocation5 + $0x14] sm:$0xf] %v293
      %326 = vst [vmem:[#allocation5 + $0x18] sm:$0xf] %v294
      %327 = vst [vmem:[#allocation5 + $0x1c] sm:$0xf] %v295
      %328 = vst [vmem:[#allocation5 + $0x20] sm:$0xf] %v296
      %329 = vst [vmem:[#allocation5 + $0x24] sm:$0xf] %v297
      %330 = vst [vmem:[#allocation5 + $0x28] sm:$0xf] %v298
      %331 = vst [vmem:[#allocation5 + $0x2c] sm:$0xf] %v299
      %332 = vst [vmem:[#allocation5 + $0x30] sm:$0xf] %v300
      %333 = vst [vmem:[#allocation5 + $0x34] sm:$0xf] %v301
      %334 = vst [vmem:[#allocation5 + $0x38] sm:$0xf] %v302
      %335 = vst [vmem:[#allocation5 + $0x3c] sm:$0xf] %v303
    $region13: #{tpu_custom_call.1} parent=1 // pred_fallthru
      _
    %p336 = scmp.eq.s32.totalorder 0, 0
    // Predicated region
    $region14: #{tpu_custom_call.1} parent=1 // pred_check
      %p337 = pneg %p336
    $region15: #{tpu_custom_call.1} parent=1 // pred_check_branch
      %339 = sbr.rel (%p337) target = $region17
    $region16: #{tpu_custom_call.1} parent=1 // pred_region
      %vm340 = vcmask 7168
      %341 = vst.msk [vmem:[%s2] sm:$0xff] %vm340, 0.0
      %342 = vst.msk [vmem:[%s2 + $0x8] sm:$0xff] %vm340, 0.0
      %343 = vst.msk [vmem:[%s2 + $0x10] sm:$0xff] %vm340, 0.0
      %344 = vst.msk [vmem:[%s2 + $0x18] sm:$0xff] %vm340, 0.0
      %345 = vst.msk [vmem:[%s2 + $0x20] sm:$0xff] %vm340, 0.0
      %346 = vst.msk [vmem:[%s2 + $0x28] sm:$0xff] %vm340, 0.0
      %347 = vst.msk [vmem:[%s2 + $0x30] sm:$0xff] %vm340, 0.0
      %348 = vst.msk [vmem:[%s2 + $0x38] sm:$0xff] %vm340, 0.0
      %349 = vst.msk [vmem:[%s2 + $0x40] sm:$0xff] %vm340, 0.0
      %350 = vst.msk [vmem:[%s2 + $0x48] sm:$0xff] %vm340, 0.0
      %351 = vst.msk [vmem:[%s2 + $0x50] sm:$0xff] %vm340, 0.0
      %352 = vst.msk [vmem:[%s2 + $0x58] sm:$0xff] %vm340, 0.0
      %353 = vst.msk [vmem:[%s2 + $0x60] sm:$0xff] %vm340, 0.0
      %354 = vst.msk [vmem:[%s2 + $0x68] sm:$0xff] %vm340, 0.0
      %355 = vst.msk [vmem:[%s2 + $0x70] sm:$0xff] %vm340, 0.0
      %356 = vst.msk [vmem:[%s2 + $0x78] sm:$0xff] %vm340, 0.0
    $region17: #{tpu_custom_call.1} parent=1 // pred_fallthru
      _
    %v357 = vld [vmem:[%s2] sm:$0xff]
    %v358 = vld [vmem:[%s2 + $0x8] sm:$0xff]
    %v359 = vld [vmem:[%s2 + $0x10] sm:$0xff]
    %v360 = vld [vmem:[%s2 + $0x18] sm:$0xff]
    %v361 = vld [vmem:[%s2 + $0x20] sm:$0xff]
    %v362 = vld [vmem:[%s2 + $0x28] sm:$0xff]
    %v363 = vld [vmem:[%s2 + $0x30] sm:$0xff]
    %v364 = vld [vmem:[%s2 + $0x38] sm:$0xff]
    %v365 = vld [vmem:[%s2 + $0x40] sm:$0xff]
    %v366 = vld [vmem:[%s2 + $0x48] sm:$0xff]
    %v367 = vld [vmem:[%s2 + $0x50] sm:$0xff]
    %v368 = vld [vmem:[%s2 + $0x58] sm:$0xff]
    %v369 = vld [vmem:[%s2 + $0x60] sm:$0xff]
    %v370 = vld [vmem:[%s2 + $0x68] sm:$0xff]
    %v371 = vld [vmem:[%s2 + $0x70] sm:$0xff]
    %v372 = vld [vmem:[%s2 + $0x78] sm:$0xff]
    %v373 = vld [vmem:[#allocation5] sm:$0xf]
    %v374 = vld [vmem:[#allocation5 + $0x4] sm:$0xf]
    %v375 = vld [vmem:[#allocation5 + $0x8] sm:$0xf]
    %v376 = vld [vmem:[#allocation5 + $0xc] sm:$0xf]
    %v377 = vld [vmem:[#allocation5 + $0x10] sm:$0xf]
    %v378 = vld [vmem:[#allocation5 + $0x14] sm:$0xf]
    %v379 = vld [vmem:[#allocation5 + $0x18] sm:$0xf]
    %v380 = vld [vmem:[#allocation5 + $0x1c] sm:$0xf]
    %v381 = vld [vmem:[#allocation5 + $0x20] sm:$0xf]
    %v382 = vld [vmem:[#allocation5 + $0x24] sm:$0xf]
    %v383 = vld [vmem:[#allocation5 + $0x28] sm:$0xf]
    %v384 = vld [vmem:[#allocation5 + $0x2c] sm:$0xf]
    %v385 = vld [vmem:[#allocation5 + $0x30] sm:$0xf]
    %v386 = vld [vmem:[#allocation5 + $0x34] sm:$0xf]
    %v387 = vld [vmem:[#allocation5 + $0x38] sm:$0xf]
    %v388 = vld [vmem:[#allocation5 + $0x3c] sm:$0xf]
    %v389 = vunpack.c.l.bf16 %v373
    %v390 = vunpack.c.l.bf16 %v374
    %v391 = vunpack.c.l.bf16 %v375
    %v392 = vunpack.c.l.bf16 %v376
    %v393 = vunpack.c.l.bf16 %v377
    %v394 = vunpack.c.l.bf16 %v378
    %v395 = vunpack.c.l.bf16 %v379
    %v396 = vunpack.c.l.bf16 %v380
    %v397 = vunpack.c.l.bf16 %v381
    %v398 = vunpack.c.l.bf16 %v382
    %v399 = vunpack.c.l.bf16 %v383
    %v400 = vunpack.c.l.bf16 %v384
    %v401 = vunpack.c.l.bf16 %v385
    %v402 = vunpack.c.l.bf16 %v386
    %v403 = vunpack.c.l.bf16 %v387
    %v404 = vunpack.c.l.bf16 %v388
    %405 = vadd.xlane.f32.xlu0 %v389
    %v406 = vpop.xlane.xlu0 %405
    %407 = vadd.xlane.f32.xlu0 %v390
    %v408 = vpop.xlane.xlu0 %407
    %409 = vadd.xlane.f32.xlu0 %v391
    %v410 = vpop.xlane.xlu0 %409
    %411 = vadd.xlane.f32.xlu0 %v392
    %v412 = vpop.xlane.xlu0 %411
    %413 = vadd.xlane.f32.xlu0 %v393
    %v414 = vpop.xlane.xlu0 %413
    %415 = vadd.xlane.f32.xlu0 %v394
    %v416 = vpop.xlane.xlu0 %415
    %417 = vadd.xlane.f32.xlu0 %v395
    %v418 = vpop.xlane.xlu0 %417
    %419 = vadd.xlane.f32.xlu0 %v396
    %v420 = vpop.xlane.xlu0 %419
    %421 = vadd.xlane.f32.xlu0 %v397
    %v422 = vpop.xlane.xlu0 %421
    %423 = vadd.xlane.f32.xlu0 %v398
    %v424 = vpop.xlane.xlu0 %423
    %425 = vadd.xlane.f32.xlu0 %v399
    %v426 = vpop.xlane.xlu0 %425
    %427 = vadd.xlane.f32.xlu0 %v400
    %v428 = vpop.xlane.xlu0 %427
    %429 = vadd.xlane.f32.xlu0 %v401
    %v430 = vpop.xlane.xlu0 %429
    %431 = vadd.xlane.f32.xlu0 %v402
    %v432 = vpop.xlane.xlu0 %431
    %433 = vadd.xlane.f32.xlu0 %v403
    %v434 = vpop.xlane.xlu0 %433
    %435 = vadd.xlane.f32.xlu0 %v404
    %v436 = vpop.xlane.xlu0 %435
    %v437 = vadd.f32 %v357, %v406
    %v438 = vadd.f32 %v358, %v408
    %v439 = vadd.f32 %v359, %v410
    %v440 = vadd.f32 %v360, %v412
    %v441 = vadd.f32 %v361, %v414
    %v442 = vadd.f32 %v362, %v416
    %v443 = vadd.f32 %v363, %v418
    %v444 = vadd.f32 %v364, %v420
    %v445 = vadd.f32 %v365, %v422
    %v446 = vadd.f32 %v366, %v424
    %v447 = vadd.f32 %v367, %v426
    %v448 = vadd.f32 %v368, %v428
    %v449 = vadd.f32 %v369, %v430
    %v450 = vadd.f32 %v370, %v432
    %v451 = vadd.f32 %v371, %v434
    %v452 = vadd.f32 %v372, %v436
    %vm453 = vcmask 7168
    %454 = vst.msk [vmem:[%s2] sm:$0xff] %vm453, %v437
    %455 = vst.msk [vmem:[%s2 + $0x8] sm:$0xff] %vm453, %v438
    %456 = vst.msk [vmem:[%s2 + $0x10] sm:$0xff] %vm453, %v439
    %457 = vst.msk [vmem:[%s2 + $0x18] sm:$0xff] %vm453, %v440
    %458 = vst.msk [vmem:[%s2 + $0x20] sm:$0xff] %vm453, %v441
    %459 = vst.msk [vmem:[%s2 + $0x28] sm:$0xff] %vm453, %v442
    %460 = vst.msk [vmem:[%s2 + $0x30] sm:$0xff] %vm453, %v443
    %461 = vst.msk [vmem:[%s2 + $0x38] sm:$0xff] %vm453, %v444
    %462 = vst.msk [vmem:[%s2 + $0x40] sm:$0xff] %vm453, %v445
    %463 = vst.msk [vmem:[%s2 + $0x48] sm:$0xff] %vm453, %v446
    %464 = vst.msk [vmem:[%s2 + $0x50] sm:$0xff] %vm453, %v447
    %465 = vst.msk [vmem:[%s2 + $0x58] sm:$0xff] %vm453, %v448
    %466 = vst.msk [vmem:[%s2 + $0x60] sm:$0xff] %vm453, %v449
    %467 = vst.msk [vmem:[%s2 + $0x68] sm:$0xff] %vm453, %v450
    %468 = vst.msk [vmem:[%s2 + $0x70] sm:$0xff] %vm453, %v451
    %469 = vst.msk [vmem:[%s2 + $0x78] sm:$0xff] %vm453, %v452
    // Predicated region
    $region18: #{tpu_custom_call.1} parent=1 // pred_check
      %p470 = pneg %p336
    $region19: #{tpu_custom_call.1} parent=1 // pred_check_branch
      %472 = sbr.rel (%p470) target = $region21
    $region20: #{tpu_custom_call.1} parent=1 // pred_region
      %v473 = vld [vmem:[%s2] sm:$0xff]
      %v474 = vld [vmem:[%s2 + $0x8] sm:$0xff]
      %v475 = vld [vmem:[%s2 + $0x10] sm:$0xff]
      %v476 = vld [vmem:[%s2 + $0x18] sm:$0xff]
      %v477 = vld [vmem:[%s2 + $0x20] sm:$0xff]
      %v478 = vld [vmem:[%s2 + $0x28] sm:$0xff]
      %v479 = vld [vmem:[%s2 + $0x30] sm:$0xff]
      %v480 = vld [vmem:[%s2 + $0x38] sm:$0xff]
      %v481 = vld [vmem:[%s2 + $0x40] sm:$0xff]
      %v482 = vld [vmem:[%s2 + $0x48] sm:$0xff]
      %v483 = vld [vmem:[%s2 + $0x50] sm:$0xff]
      %v484 = vld [vmem:[%s2 + $0x58] sm:$0xff]
      %v485 = vld [vmem:[%s2 + $0x60] sm:$0xff]
      %v486 = vld [vmem:[%s2 + $0x68] sm:$0xff]
      %v487 = vld [vmem:[%s2 + $0x70] sm:$0xff]
      %v488 = vld [vmem:[%s2 + $0x78] sm:$0xff]
      %v489 = vrsqrt.pop %v473
      %v490 = vrsqrt.pop %v474
      %v491 = vrsqrt.pop %v475
      %v492 = vrsqrt.pop %v476
      %v493 = vrsqrt.pop %v477
      %v494 = vrsqrt.pop %v478
      %v495 = vrsqrt.pop %v479
      %v496 = vrsqrt.pop %v480
      %v497 = vrsqrt.pop %v481
      %v498 = vrsqrt.pop %v482
      %v499 = vrsqrt.pop %v483
      %v500 = vrsqrt.pop %v484
      %v501 = vrsqrt.pop %v485
      %v502 = vrsqrt.pop %v486
      %v503 = vrsqrt.pop %v487
      %v504 = vrsqrt.pop %v488
      %505 = vst.msk [vmem:[%s2] sm:$0xff] %vm453, %v489
      %506 = vst.msk [vmem:[%s2 + $0x8] sm:$0xff] %vm453, %v490
      %507 = vst.msk [vmem:[%s2 + $0x10] sm:$0xff] %vm453, %v491
      %508 = vst.msk [vmem:[%s2 + $0x18] sm:$0xff] %vm453, %v492
      %509 = vst.msk [vmem:[%s2 + $0x20] sm:$0xff] %vm453, %v493
      %510 = vst.msk [vmem:[%s2 + $0x28] sm:$0xff] %vm453, %v494
      %511 = vst.msk [vmem:[%s2 + $0x30] sm:$0xff] %vm453, %v495
      %512 = vst.msk [vmem:[%s2 + $0x38] sm:$0xff] %vm453, %v496
      %513 = vst.msk [vmem:[%s2 + $0x40] sm:$0xff] %vm453, %v497
      %514 = vst.msk [vmem:[%s2 + $0x48] sm:$0xff] %vm453, %v498
      %515 = vst.msk [vmem:[%s2 + $0x50] sm:$0xff] %vm453, %v499
      %516 = vst.msk [vmem:[%s2 + $0x58] sm:$0xff] %vm453, %v500
      %517 = vst.msk [vmem:[%s2 + $0x60] sm:$0xff] %vm453, %v501
      %518 = vst.msk [vmem:[%s2 + $0x68] sm:$0xff] %vm453, %v502
      %519 = vst.msk [vmem:[%s2 + $0x70] sm:$0xff] %vm453, %v503
      %520 = vst.msk [vmem:[%s2 + $0x78] sm:$0xff] %vm453, %v504
    $region21: #{tpu_custom_call.1} parent=1 // pred_fallthru
      _
    // Predicated region
    $region22: #{tpu_custom_call.1} parent=1 // pred_check
      _
    $region23: #{tpu_custom_call.1} parent=1 // pred_check_branch
      %522 = sbr.rel (0) target = $region25
    $region24: #{tpu_custom_call.1} parent=1 // pred_region
      %s524 = ssub.s32 1024, 1024
      %525 = vsyncadd [#allocation4], %s524
      %s526 = sshll.u32 [#allocation5], 4
      %s527 = int_to_ptr.vmem [resolvable:$true] %s526
      %532 = dma.vmem_to_hbm [thread:$0]  %s527, 1024, %s1, [#allocation4], 64, 64, 4
    $region25: #{tpu_custom_call.1} parent=1 // pred_fallthru
      _
    // Predicated region
    $region26: #{tpu_custom_call.1} parent=1 // pred_check
      _
    $region27: #{tpu_custom_call.1} parent=1 // pred_check_branch
      %534 = sbr.rel (0) target = $region29
    $region28: #{tpu_custom_call.1} parent=1 // pred_region
      _
    $region29: #{tpu_custom_call.1} parent=1 // pred_fallthru
      _
    // Predicated region
    $region30: #{tpu_custom_call.1} parent=1 // pred_check
      _
    $region31: #{tpu_custom_call.1} parent=1 // pred_check_branch
      %536 = sbr.rel (0) target = $region33
    $region32: #{tpu_custom_call.1} parent=1 // pred_region
      %537 = dma.done [#allocation4], 1024
    $region33: #{tpu_custom_call.1} parent=1 // pred_fallthru
      _
    // Predicated region
    $region34: #{tpu_custom_call.1} parent=1 // pred_check
      _
    $region35: #{tpu_custom_call.1} parent=1 // pred_check_branch
      %539 = sbr.rel (0) target = $region37
    $region36: #{tpu_custom_call.1} parent=1 // pred_region
      _
    $region37: #{tpu_custom_call.1} parent=1 // pred_fallthru
      _
    %540 = vsyncpa [#allocation3], 1
    %541 = vsyncpa [#allocation4], 1

</llo_original>
